<compile_context>
chip_gen: v7x
topology: tpu7x:2x2x1
jax: 0.10.0
libtpu: 0.0.40
codegen_flags: <defaults>
</compile_context>

<pallas_src>
import functools

import jax
import jax.numpy as jnp
import numpy as np
from jax import lax
from jax.experimental import pallas as pl
from jax.experimental.pallas import tpu as pltpu


# ----------------------------- Pallas kernel ---------------------------------


def _make_gru_kernel(Hd):
    """Fused ConvGRU gate kernel. One batch-tile of flattened pixels per grid step."""

    def kernel(p_ref, h_ref, w_ref, b_ref, out_ref):
        # p_ref : (Kpad, TN)  bf16  im2col patches (x taps ++ h taps, zero-padded rows)
        # h_ref : (Hd,   TN)  f32   previous hidden state (unquantized) for the blend
        # w_ref : (6*Hd, Kpad) bf16 block-diagonal [w_ih ; w_hh]
        # b_ref : (3*Hd, 1)   f32   ih bias
        # out_ref: (Hd,  TN)  f32   new hidden state

        # Single MXU pass: rows [0,3Hd) = ih conv, rows [3Hd,6Hd) = hh conv.
        g = jnp.dot(w_ref[...], p_ref[...], preferred_element_type=jnp.float32)
        b = b_ref[...]  # (3*Hd, 1) broadcasts over lanes

        # GRU gates (chunk(3, channel) semantics). All gate math in f32
        # (v5e-safe: no bf16 VPU/EUP path).
        r = jax.nn.sigmoid(g[:Hd] + b[:Hd] + g[3 * Hd:4 * Hd])
        z = jax.nn.sigmoid(g[Hd:2 * Hd] + b[Hd:2 * Hd] + g[4 * Hd:5 * Hd])
        n = jnp.tanh(g[2 * Hd:3 * Hd] + b[2 * Hd:3 * Hd] + r * g[5 * Hd:6 * Hd])

        h_prev = h_ref[...]  # f32, lane-dense
        out_ref[...] = (n * (1.0 - z) + z * h_prev).astype(out_ref.dtype)

    return kernel


# ----------------------------- weight prep (once per model, not per step) ----


def _round_up(x, m):
    return ((x + m - 1) // m) * m


def prepare_conv_gru_weights(w_ih, w_hh, b_ih, kernel_size):
    """Repack PyTorch OIHW conv weights into the fused block-diagonal matmul weight.

    Returns (w_cat bf16 (6*Hd, Kpad), b_col f32 (3*Hd, 1)). Do this ONCE outside
    the per-timestep path.
    """
    K = kernel_size
    threeHd, Cin = w_ih.shape[0], w_ih.shape[1]
    Hd = threeHd // 3
    KKC, KKH = K * K * Cin, K * K * Hd
    Kdim = KKC + KKH
    Kpad = _round_up(Kdim, 128)  # aligned MXU contraction tiles

    cdt = jnp.bfloat16
    # (O, ky, kx, I) flattening matches the patch-row ordering built below.
    w_x = jnp.transpose(w_ih, (0, 2, 3, 1)).reshape(threeHd, KKC)
    w_h = jnp.transpose(w_hh, (0, 2, 3, 1)).reshape(threeHd, KKH)
    top = jnp.concatenate(
        [w_x, jnp.zeros((threeHd, Kpad - KKC), w_x.dtype)], axis=1)
    bot = jnp.concatenate(
        [jnp.zeros((threeHd, KKC), w_h.dtype), w_h,
         jnp.zeros((threeHd, Kpad - Kdim), w_h.dtype)], axis=1)
    w_cat = jnp.concatenate([top, bot], axis=0).astype(cdt)   # (6*Hd, Kpad)
    b_col = b_ih.reshape(threeHd, 1).astype(jnp.float32)      # bias stays f32
    return w_cat, b_col


# ----------------------------- per-step forward ------------------------------


def _pick_tile_b(B, M):
    """Batch tile: fatten matmul N / DMAs, but keep >=2 grid tiles (v7x megacore)."""
    if B == 1:
        return 1
    cap = max(1, 2048 // M)          # keep block lane width modest (VMEM on v7x)
    best = 1
    for t in range(1, B // 2 + 1):   # B//t >= 2 grid steps
        if B % t == 0 and t <= cap:
            best = t
    return best


@functools.partial(jax.jit, static_argnames=("kernel_size", "dilation"))
def conv_gru_cell(x, h, w_cat, b_col, kernel_size, dilation=1):
    """ConvGRUCell forward (conv_dim=2). x:(B,Cin,H,W), h:(B,Hd,H,W) -> (B,Hd,H,W).

    w_cat/b_col come from prepare_conv_gru_weights (computed once, reused every step).
    """
    K = kernel_size
    assert (dilation * (K - 1)) % 2 == 0, "need symmetric 'same' padding"
    pad = (dilation * (K - 1)) // 2
    B, Cin, H, W = x.shape
    Hd = h.shape[1]
    M = H * W
    Kpad = w_cat.shape[1]
    Kdim = K * K * (Cin + Hd)

    cdt = jnp.bfloat16  # matmul-operand dtype; accumulation & gates stay f32

    # ---- hoisted, lane-dense im2col (XLA glue, not the hot path) ----
    # Row ordering: x taps (ky, kx major, channel minor) then h taps, matching w_cat.
    xp = jnp.pad(x, ((0, 0), (0, 0), (pad, pad), (pad, pad))).astype(cdt)
    hp = jnp.pad(h, ((0, 0), (0, 0), (pad, pad), (pad, pad))).astype(cdt)
    parts = []
    for src, C in ((xp, Cin), (hp, Hd)):
        for ky in range(K):
            oy = ky * dilation
            for kx in range(K):
                ox = kx * dilation
                tap = src[:, :, oy:oy + H, ox:ox + W]          # (B, C, H, W)
                parts.append(jnp.transpose(tap, (1, 0, 2, 3)).reshape(C, B * M))
    if Kpad > Kdim:
        parts.append(jnp.zeros((Kpad - Kdim, B * M), cdt))
    patches = jnp.concatenate(parts, axis=0)                   # (Kpad, B*M) bf16

    # Previous hidden state for the blend, f32 (no bf16 re-quantization of the state).
    h_flat = jnp.transpose(h, (1, 0, 2, 3)).reshape(Hd, B * M).astype(jnp.float32)

    tile_b = _pick_tile_b(B, M)
    tile_n = tile_b * M
    grid = (B // tile_b,)

    kernel = _make_gru_kernel(Hd)
    out = pl.pallas_call(
        kernel,
        out_shape=jax.ShapeDtypeStruct((Hd, B * M), jnp.float32),
        grid=grid,
        in_specs=[
            pl.BlockSpec((Kpad, tile_n), lambda i: (0, i)),      # patches
            pl.BlockSpec((Hd, tile_n), lambda i: (0, i)),        # f32 prev state
            pl.BlockSpec((6 * Hd, Kpad), lambda i: (0, 0)),      # resident weights
            pl.BlockSpec((3 * Hd, 1), lambda i: (0, 0)),         # resident bias
        ],
        out_specs=pl.BlockSpec((Hd, tile_n), lambda i: (0, i)),  # lane-dense stores
        compiler_params=pltpu.CompilerParams(
            dimension_semantics=("parallel",),
            vmem_limit_bytes=32 * 1024 * 1024,
        ),
    )(patches, h_flat, w_cat, b_col)

    # Layout plumbing back to NCHW (small, one XLA transpose).
    out = jnp.transpose(out.reshape(Hd, B, H, W), (1, 0, 2, 3)).astype(x.dtype)
    return out


# ---------------- deterministic parameter init (orthogonal, like reset_parameters) ----


def _orthogonal_weight(key, out_ch, in_ch, k):
    """Semi-orthogonal init over the flattened (out_ch, in_ch*k*k) matrix."""
    rows, cols = out_ch, in_ch * k * k
    big, small = max(rows, cols), min(rows, cols)
    a = np.asarray(jax.random.normal(key, (big, small), jnp.float32))
    q, r = np.linalg.qr(a)
    q = q * np.sign(np.diag(r))[None, :]
    w = q.T if rows < cols else q
    return jnp.asarray(w.reshape(out_ch, in_ch, k, k), jnp.float32)


# ---------------- pure-JAX reference for verification ----------------


def conv_gru_ref(x, h, w_ih, w_hh, b_ih, K, dilation=1, mm_dtype=jnp.bfloat16):
    """Reference: convs on mm_dtype-quantized operands (matching the MXU inputs),
    bias + gates + blend in f32, blend uses the unquantized f32 hidden state."""
    q = lambda a: a.astype(mm_dtype).astype(jnp.float32)
    pad = (dilation * (K - 1)) // 2
    dn = lax.conv_dimension_numbers(x.shape, w_ih.shape, ("NCHW", "OIHW", "NCHW"))
    ih = lax.conv_general_dilated(
        q(x), q(w_ih), (1, 1), [(pad, pad), (pad, pad)],
        rhs_dilation=(dilation, dilation), dimension_numbers=dn)
    ih = ih + b_ih[None, :, None, None]
    hh = lax.conv_general_dilated(
        q(h), q(w_hh), (1, 1), [(pad, pad), (pad, pad)],
        rhs_dilation=(dilation, dilation), dimension_numbers=dn)
    Hd = h.shape[1]
    r = jax.nn.sigmoid(ih[:, :Hd] + hh[:, :Hd])
    z = jax.nn.sigmoid(ih[:, Hd:2 * Hd] + hh[:, Hd:2 * Hd])
    n = jnp.tanh(ih[:, 2 * Hd:] + r * hh[:, 2 * Hd:])
    return n * (1.0 - z) + z * h


if __name__ == "__main__":
    # ConvGRUCell(input_size=4, hidden_size=8, conv_dim=2, kernel_size=3, dilation=1, bias=True)
    B, Cin, Hd, H, W, K = 2, 4, 8, 16, 16, 3
    dilation = 1

    key = jax.random.PRNGKey(0)
    k_x, k_h, k_wih, k_whh = jax.random.split(key, 4)

    x = jax.random.normal(k_x, (B, Cin, H, W), jnp.float32)
    hx = jax.random.normal(k_h, (B, Hd, H, W), jnp.float32)

    w_ih = _orthogonal_weight(k_wih, 3 * Hd, Cin, K)   # ih conv weight (OIHW)
    w_hh = _orthogonal_weight(k_whh, 3 * Hd, Hd, K)    # hh conv weight (OIHW)
    b_ih = jnp.zeros((3 * Hd,), jnp.float32)           # bias=True -> zeros_ init

    # Weight repack done once (outside the per-timestep path).
    w_cat, b_col = prepare_conv_gru_weights(w_ih, w_hh, b_ih, kernel_size=K)

    out = conv_gru_cell(x, hx, w_cat, b_col, kernel_size=K, dilation=dilation)
    out = jax.block_until_ready(out)

    ref = conv_gru_ref(x, hx, w_ih, w_hh, b_ih, K, dilation)
    np.testing.assert_allclose(np.asarray(out), np.asarray(ref), atol=2e-3, rtol=2e-3)

    print("KERNEL_OK")
</pallas_src>

<mosaic_0001>
module attributes {stable_mosaic.version = 11 : i64} {
  func.func @kernel(%arg0: i32, %arg1: memref<128x256xbf16, #tpu.memory_space<vmem>>, %arg2: memref<8x256xf32, #tpu.memory_space<vmem>>, %arg3: memref<48x128xbf16, #tpu.memory_space<vmem>>, %arg4: memref<24x1xf32, #tpu.memory_space<vmem>>, %arg5: memref<8x256xf32, #tpu.memory_space<vmem>>) attributes {dimension_semantics = [#tpu.dimension_semantics<parallel>], iteration_bounds = array<i64: 2>, scalar_prefetch = 0 : i64, scratch_operands = 0 : i64, tpu.core_type = #tpu.core_type<tc>, window_params = [{transform_indices = @transform_0, window_bounds = array<i64: 128, 256>}, {transform_indices = @transform_1, window_bounds = array<i64: 8, 256>}, {pipeline_mode = #tpu.pipeline_mode<synchronous>, transform_indices = @transform_2, window_bounds = array<i64: 48, 128>}, {pipeline_mode = #tpu.pipeline_mode<synchronous>, transform_indices = @transform_3, window_bounds = array<i64: 24, 1>}, {transform_indices = @transform_4, window_bounds = array<i64: 8, 256>}]} {
    %c0 = arith.constant 0 : index
    %c0_0 = arith.constant 0 : index
    %0 = vector.load %arg3[%c0, %c0_0] : memref<48x128xbf16, #tpu.memory_space<vmem>>, vector<48x128xbf16>
    %c0_1 = arith.constant 0 : index
    %c0_2 = arith.constant 0 : index
    %1 = vector.load %arg1[%c0_1, %c0_2] : memref<128x256xbf16, #tpu.memory_space<vmem>>, vector<128x256xbf16>
    %cst = arith.constant dense<0.000000e+00> : vector<48x256xf32>
    %2 = tpu.matmul %0, %1, %cst {dimension_numbers = #tpu.dot_dimension_numbers<[1], [0], [0], [1], [0, 0, 1, 1], [], []>} : vector<48x128xbf16>, vector<128x256xbf16>, vector<48x256xf32> -> vector<48x256xf32>
    %c0_3 = arith.constant 0 : index
    %c0_4 = arith.constant 0 : index
    %3 = vector.load %arg4[%c0_3, %c0_4] : memref<24x1xf32, #tpu.memory_space<vmem>>, vector<24x1xf32>
    %4 = vector.extract_strided_slice %2 {offsets = [0, 0], sizes = [8, 256], strides = [1, 1]} : vector<48x256xf32> to vector<8x256xf32>
    %5 = vector.extract_strided_slice %3 {offsets = [0, 0], sizes = [8, 1], strides = [1, 1]} : vector<24x1xf32> to vector<8x1xf32>
    %6 = vector.broadcast %5 : vector<8x1xf32> to vector<8x256xf32>
    %7 = arith.addf %4, %6 : vector<8x256xf32>
    %8 = vector.extract_strided_slice %2 {offsets = [24, 0], sizes = [8, 256], strides = [1, 1]} : vector<48x256xf32> to vector<8x256xf32>
    %9 = arith.addf %7, %8 : vector<8x256xf32>
    %10 = arith.negf %9 : vector<8x256xf32>
    %11 = math.exp %10 : vector<8x256xf32>
    %cst_5 = arith.constant 1.000000e+00 : f32
    %12 = vector.broadcast %cst_5 : f32 to vector<8x256xf32>
    %13 = arith.addf %12, %11 : vector<8x256xf32>
    %14 = arith.divf %12, %13 : vector<8x256xf32>
    %15 = vector.extract_strided_slice %2 {offsets = [8, 0], sizes = [8, 256], strides = [1, 1]} : vector<48x256xf32> to vector<8x256xf32>
    %16 = vector.extract_strided_slice %3 {offsets = [8, 0], sizes = [8, 1], strides = [1, 1]} : vector<24x1xf32> to vector<8x1xf32>
    %17 = vector.broadcast %16 : vector<8x1xf32> to vector<8x256xf32>
    %18 = arith.addf %15, %17 : vector<8x256xf32>
    %19 = vector.extract_strided_slice %2 {offsets = [32, 0], sizes = [8, 256], strides = [1, 1]} : vector<48x256xf32> to vector<8x256xf32>
    %20 = arith.addf %18, %19 : vector<8x256xf32>
    %21 = arith.negf %20 : vector<8x256xf32>
    %22 = math.exp %21 : vector<8x256xf32>
    %cst_6 = arith.constant 1.000000e+00 : f32
    %23 = vector.broadcast %cst_6 : f32 to vector<8x256xf32>
    %24 = arith.addf %23, %22 : vector<8x256xf32>
    %25 = arith.divf %23, %24 : vector<8x256xf32>
    %26 = vector.extract_strided_slice %2 {offsets = [16, 0], sizes = [8, 256], strides = [1, 1]} : vector<48x256xf32> to vector<8x256xf32>
    %27 = vector.extract_strided_slice %3 {offsets = [16, 0], sizes = [8, 1], strides = [1, 1]} : vector<24x1xf32> to vector<8x1xf32>
    %28 = vector.broadcast %27 : vector<8x1xf32> to vector<8x256xf32>
    %29 = arith.addf %26, %28 : vector<8x256xf32>
    %30 = vector.extract_strided_slice %2 {offsets = [40, 0], sizes = [8, 256], strides = [1, 1]} : vector<48x256xf32> to vector<8x256xf32>
    %31 = arith.mulf %14, %30 : vector<8x256xf32>
    %32 = arith.addf %29, %31 : vector<8x256xf32>
    %33 = math.tanh %32 : vector<8x256xf32>
    %c0_7 = arith.constant 0 : index
    %c0_8 = arith.constant 0 : index
    %34 = vector.load %arg2[%c0_7, %c0_8] : memref<8x256xf32, #tpu.memory_space<vmem>>, vector<8x256xf32>
    %cst_9 = arith.constant 1.000000e+00 : f32
    %35 = vector.broadcast %cst_9 : f32 to vector<8x256xf32>
    %36 = arith.subf %35, %25 : vector<8x256xf32>
    %37 = arith.mulf %33, %36 : vector<8x256xf32>
    %38 = arith.mulf %25, %34 : vector<8x256xf32>
    %39 = arith.addf %37, %38 : vector<8x256xf32>
    %c0_10 = arith.constant 0 : index
    %c0_11 = arith.constant 0 : index
    %40 = vector.load %arg5[%c0_10, %c0_11] : memref<8x256xf32, #tpu.memory_space<vmem>>, vector<8x256xf32>
    tpu.vector_store %arg5[%c0_10, %c0_11], %39 {strides = array<i32>} : memref<8x256xf32, #tpu.memory_space<vmem>>, vector<8x256xf32>,
    return
  }
  func.func @transform_0(%arg0: i32) -> (i32, i32) {
    %c0_i32 = arith.constant 0 : i32
    %c0_i32_0 = arith.constant 0 : i32
    return %c0_i32, %arg0 : i32, i32
  }
  func.func @transform_1(%arg0: i32) -> (i32, i32) {
    %c0_i32 = arith.constant 0 : i32
    %c0_i32_0 = arith.constant 0 : i32
    return %c0_i32, %arg0 : i32, i32
  }
  func.func @transform_2(%arg0: i32) -> (i32, i32) {
    %c0_i32 = arith.constant 0 : i32
    %c0_i32_0 = arith.constant 0 : i32
    %c0_i32_1 = arith.constant 0 : i32
    return %c0_i32, %c0_i32_0 : i32, i32
  }
  func.func @transform_3(%arg0: i32) -> (i32, i32) {
    %c0_i32 = arith.constant 0 : i32
    %c0_i32_0 = arith.constant 0 : i32
    %c0_i32_1 = arith.constant 0 : i32
    return %c0_i32, %c0_i32_0 : i32, i32
  }
  func.func @transform_4(%arg0: i32) -> (i32, i32) {
    %c0_i32 = arith.constant 0 : i32
    %c0_i32_0 = arith.constant 0 : i32
    return %c0_i32, %arg0 : i32, i32
  }
}

</mosaic_0001>

<llo_original>
// kernel: conv_gru_cell.1
$region0: #{conv_gru_cell.1}
  #allocation0 [shape = 'u32[]', space=smem, size = 0x4, offset = 0x4, fixed_abs, tag = 'smem constant byte address 0x4 - core index']
  #allocation1 [shape = 'u32[144,128]{1,0:T(1,128)}', space=vmem, size = 0x12000, scoped, tag = 'internal scratch']
  %s0 = inlined_call_operand.vmem [shape: bf16[128,512], index: 0, kind: input, shape index: {}]
  %s1 = inlined_call_operand.vmem [shape: f32[8,512], index: 1, kind: input, shape index: {}]
  %s2 = inlined_call_operand.vmem [shape: bf16[48,128], index: 2, kind: input, shape index: {}]
  %s3 = inlined_call_operand.vmem [shape: f32[24,1], index: 3, kind: input, shape index: {}]
  %s4 = inlined_call_operand.vmem [shape: f32[8,512], index: 4, kind: output, shape index: {}]
  %s5 = sld [smem:[#allocation0]]
  $region87: #{conv_gru_cell.1} parent=0
    _
  %s7 = ssub.s32 1, %s5
  %s8 = scalar_select 0, %s7, %s5
  $region1: #{conv_gru_cell.1} parent=0
    #allocation2 [shape = 'u8[131072]{0}', space=vmem, size = 0x20000, scoped, tag = 'input window, operand 0']
    loop: start=0, step=1, limit=4
    $region2: #{conv_gru_cell.1} parent=1 // loop_pre_header
      _
    $region3: #{conv_gru_cell.1} parent=1 // loop_header
      %s10 = sphi 0, %s14
      %p11 = scmp.ge.s32.totalorder %s10, 4
      %s20 = sphi 0, %s22
      %s23 = sphi 0, %s20
      %s24 = sphi 0, %s23
      %s40 = sphi 0, %s24
      %s46 = sphi 0, %s48
      %s49 = sphi 0, %s46
      %s50 = sphi 0, %s49
      %s66 = sphi 0, %s50
      %s70 = sphi 0, %s70
      %s72 = sphi 0, %s70
      %s73 = sphi 0, %s72
      %s87 = sphi 0, %s73
      %s91 = sphi 0, %s91
      %s93 = sphi 0, %s91
      %s94 = sphi 0, %s93
      %s108 = sphi 0, %s94
      %s114 = sphi 0, %s116
      %s117 = sphi 0, %s114
      %s118 = sphi 0, %s117
      %s134 = sphi 0, %s118
    $region4: #{conv_gru_cell.1} parent=1 // loop_header_branch
      %13 = sbr.rel (%p11) target = $region8
    $region5: #{conv_gru_cell.1} parent=1 // loop_body
      %s15 = ssub.s32 %s10, 1
      %s16 = ssub.s32 %s10, 2
      %s17 = sadd.s32 %s10, 1
      %s18 = ssub.s32 %s10, %s17
      %p19 = scmp.eq.s32.totalorder %s18, 0
      %s21 = sadd.s32 %s20, 1
      %s22 = scalar_select %p19, %s20, %s21
      %p25 = pneg %p19
      %p26 = scmp.eq.s32.totalorder %s10, 1
      %p27 = por %p25, %p26
      %p28 = scmp.ne.s32.totalorder %s20, %s23
      %p29 = scmp.eq.s32.totalorder %s10, 0
      %p30 = por %p28, %p29
      %p31 = scmp.ne.s32.totalorder %s20, %s23
      %p32 = scmp.eq.s32.totalorder %s15, 1
      %p33 = por %p31, %p32
      %p34 = scmp.ne.s32.totalorder %s23, %s24
      %p35 = scmp.eq.s32.totalorder %s15, 0
      %p36 = por %p34, %p35
      %p37 = scmp.ne.s32.totalorder %s23, %s24
      %p38 = scmp.eq.s32.totalorder %s16, 1
      %p39 = por %p37, %p38
      %p41 = scmp.ne.s32.totalorder %s24, %s40
      %p42 = scmp.eq.s32.totalorder %s16, 0
      %p43 = por %p41, %p42
      %s44 = ssub.s32 %s10, %s17
      %p45 = scmp.eq.s32.totalorder %s44, 0
      %s47 = sadd.s32 %s46, 1
      %s48 = scalar_select %p45, %s46, %s47
      %p51 = pneg %p45
      %p52 = scmp.eq.s32.totalorder %s10, 1
      %p53 = por %p51, %p52
      %p54 = scmp.ne.s32.totalorder %s46, %s49
      %p55 = scmp.eq.s32.totalorder %s10, 0
      %p56 = por %p54, %p55
      %p57 = scmp.ne.s32.totalorder %s46, %s49
      %p58 = scmp.eq.s32.totalorder %s15, 1
      %p59 = por %p57, %p58
      %p60 = scmp.ne.s32.totalorder %s49, %s50
      %p61 = scmp.eq.s32.totalorder %s15, 0
      %p62 = por %p60, %p61
      %p63 = scmp.ne.s32.totalorder %s49, %s50
      %p64 = scmp.eq.s32.totalorder %s16, 1
      %p65 = por %p63, %p64
      %p67 = scmp.ne.s32.totalorder %s50, %s66
      %p68 = scmp.eq.s32.totalorder %s16, 0
      %p69 = por %p67, %p68
      %s71 = sadd.s32 %s70, 1
      %p74 = scmp.eq.s32.totalorder %s10, 1
      %p75 = scmp.ne.s32.totalorder %s70, %s72
      %p76 = scmp.eq.s32.totalorder %s10, 0
      %p77 = por %p75, %p76
      %p78 = scmp.ne.s32.totalorder %s70, %s72
      %p79 = scmp.eq.s32.totalorder %s15, 1
      %p80 = por %p78, %p79
      %p81 = scmp.ne.s32.totalorder %s72, %s73
      %p82 = scmp.eq.s32.totalorder %s15, 0
      %p83 = por %p81, %p82
      %p84 = scmp.ne.s32.totalorder %s72, %s73
      %p85 = scmp.eq.s32.totalorder %s16, 1
      %p86 = por %p84, %p85
      %p88 = scmp.ne.s32.totalorder %s73, %s87
      %p89 = scmp.eq.s32.totalorder %s16, 0
      %p90 = por %p88, %p89
      %s92 = sadd.s32 %s91, 1
      %p95 = scmp.eq.s32.totalorder %s10, 1
      %p96 = scmp.ne.s32.totalorder %s91, %s93
      %p97 = scmp.eq.s32.totalorder %s10, 0
      %p98 = por %p96, %p97
      %p99 = scmp.ne.s32.totalorder %s91, %s93
      %p100 = scmp.eq.s32.totalorder %s15, 1
      %p101 = por %p99, %p100
      %p102 = scmp.ne.s32.totalorder %s93, %s94
      %p103 = scmp.eq.s32.totalorder %s15, 0
      %p104 = por %p102, %p103
      %p105 = scmp.ne.s32.totalorder %s93, %s94
      %p106 = scmp.eq.s32.totalorder %s16, 1
      %p107 = por %p105, %p106
      %p109 = scmp.ne.s32.totalorder %s94, %s108
      %p110 = scmp.eq.s32.totalorder %s16, 0
      %p111 = por %p109, %p110
      %s112 = ssub.s32 %s10, %s17
      %p113 = scmp.eq.s32.totalorder %s112, 0
      %s115 = sadd.s32 %s114, 1
      %s116 = scalar_select %p113, %s114, %s115
      %p119 = pneg %p113
      %p120 = scmp.eq.s32.totalorder %s10, 1
      %p121 = por %p119, %p120
      %p122 = scmp.ne.s32.totalorder %s114, %s117
      %p123 = scmp.eq.s32.totalorder %s10, 0
      %p124 = por %p122, %p123
      %p125 = scmp.ne.s32.totalorder %s114, %s117
      %p126 = scmp.eq.s32.totalorder %s15, 1
      %p127 = por %p125, %p126
      %p128 = scmp.ne.s32.totalorder %s117, %s118
      %p129 = scmp.eq.s32.totalorder %s15, 0
      %p130 = por %p128, %p129
      %p131 = scmp.ne.s32.totalorder %s117, %s118
      %p132 = scmp.eq.s32.totalorder %s16, 1
      %p133 = por %p131, %p132
      %p135 = scmp.ne.s32.totalorder %s118, %s134
      %p136 = scmp.eq.s32.totalorder %s16, 0
      %p137 = por %p135, %p136
      %p138 = scmp.le.s32.totalorder 1, %s10
      %p139 = scmp.lt.s32.totalorder %s10, 3
      %p140 = pnand %p138, %p139
      %p141 = pneg %p140
      // Predicated region
      $region9: #{conv_gru_cell.1} parent=5 // pred_check
        _
      $region10: #{conv_gru_cell.1} parent=5 // pred_check_branch
        %143 = sbr.rel (%p140) target = $region12
      $region11: #{conv_gru_cell.1} parent=5 // pred_region
        %s144 = ssub.s32 %s10, 1
        // Predicated region
        $region13: #{conv_gru_cell.1} parent=11 // pred_check
          %p145 = pneg %p83
        $region14: #{conv_gru_cell.1} parent=11 // pred_check_branch
          %147 = sbr.rel (%p145) target = $region16
        $region15: #{conv_gru_cell.1} parent=11 // pred_region
          _
        $region16: #{conv_gru_cell.1} parent=11 // pred_fallthru
          _
        // Predicated region
        $region17: #{conv_gru_cell.1} parent=11 // pred_check
          %p148 = pneg %p104
        $region18: #{conv_gru_cell.1} parent=11 // pred_check_branch
          %150 = sbr.rel (%p148) target = $region20
        $region19: #{conv_gru_cell.1} parent=11 // pred_region
          _
        $region20: #{conv_gru_cell.1} parent=11 // pred_fallthru
          _
      $region12: #{conv_gru_cell.1} parent=5 // pred_fallthru
        _
      %p151 = scmp.lt.s32.totalorder %s10, 2
      // Predicated region
      $region21: #{conv_gru_cell.1} parent=5 // pred_check
        %p152 = pneg %p151
      $region22: #{conv_gru_cell.1} parent=5 // pred_check_branch
        %154 = sbr.rel (%p152) target = $region24
      $region23: #{conv_gru_cell.1} parent=5 // pred_region
        // Predicated region
        $region25: #{conv_gru_cell.1} parent=23 // pred_check
          %p155 = pneg %p30
        $region26: #{conv_gru_cell.1} parent=23 // pred_check_branch
          %157 = sbr.rel (%p155) target = $region28
        $region27: #{conv_gru_cell.1} parent=23 // pred_region
          %s158 = sand.u32 %s20, 1
          %s159 = sand.u32 %s20, 1
          %s160 = smul.addr %s159, 128
          %s161 = scalar_lea.vmem [#allocation2], %s160
          %s162 = smul.u32 2, %s10
          %s163 = smul.addr %s162, 4
          %s164 = scalar_lea.vmem %s0, %s163
          // Predicated region
          $region29: #{conv_gru_cell.1} parent=27 // pred_check
            _
          $region30: #{conv_gru_cell.1} parent=27 // pred_check_branch
            %166 = sbr.rel (0) target = $region32
          $region31: #{conv_gru_cell.1} parent=27 // pred_region
            // Predicated region
            $region33: #{conv_gru_cell.1} parent=31 // pred_check
              _
            $region34: #{conv_gru_cell.1} parent=31 // pred_check_branch
              %168 = sbr.rel (0) target = $region36
            $region35: #{conv_gru_cell.1} parent=31 // pred_region
              // Predicated region
              $region48: #{conv_gru_cell.1} parent=35 // pred_check
                _
              $region49: #{conv_gru_cell.1} parent=35 // pred_check_branch
                %213 = sbr.rel (0) target = $region51
              $region50: #{conv_gru_cell.1} parent=35 // pred_region
                loop: start=0, step=1, limit=1
                $region52: #{conv_gru_cell.1} parent=50 // loop_pre_header
                  _
                $region53: #{conv_gru_cell.1} parent=50 // loop_header
                  %s215 = sphi 0, %s219
                  %p216 = scmp.ge.s32.totalorder %s215, 1
                  %s220 = sphi %s164, %s164
                  %s221 = sphi %s161, %s161
                $region54: #{conv_gru_cell.1} parent=50 // loop_header_branch
                  %218 = sbr.rel (%p216) target = $region58
                $region55: #{conv_gru_cell.1} parent=50 // loop_body
                  %v222 = vld [vmem:[%s220] sm:$0xff]
                  %223 = vst [vmem:[%s221] sm:$0xff] %v222
                  %v224 = vld [vmem:[%s220 + $0x10] sm:$0xff]
                  %225 = vst [vmem:[%s221 + $0x8] sm:$0xff] %v224
                  %v226 = vld [vmem:[%s220 + $0x20] sm:$0xff]
                  %227 = vst [vmem:[%s221 + $0x10] sm:$0xff] %v226
                  %v228 = vld [vmem:[%s220 + $0x30] sm:$0xff]
                  %229 = vst [vmem:[%s221 + $0x18] sm:$0xff] %v228
                  %v230 = vld [vmem:[%s220 + $0x40] sm:$0xff]
                  %231 = vst [vmem:[%s221 + $0x20] sm:$0xff] %v230
                  %v232 = vld [vmem:[%s220 + $0x50] sm:$0xff]
                  %233 = vst [vmem:[%s221 + $0x28] sm:$0xff] %v232
                  %v234 = vld [vmem:[%s220 + $0x60] sm:$0xff]
                  %235 = vst [vmem:[%s221 + $0x30] sm:$0xff] %v234
                  %v236 = vld [vmem:[%s220 + $0x70] sm:$0xff]
                  %237 = vst [vmem:[%s221 + $0x38] sm:$0xff] %v236
                  %v238 = vld [vmem:[%s220 + $0x80] sm:$0xff]
                  %239 = vst [vmem:[%s221 + $0x40] sm:$0xff] %v238
                  %v240 = vld [vmem:[%s220 + $0x90] sm:$0xff]
                  %241 = vst [vmem:[%s221 + $0x48] sm:$0xff] %v240
                  %v242 = vld [vmem:[%s220 + $0xa0] sm:$0xff]
                  %243 = vst [vmem:[%s221 + $0x50] sm:$0xff] %v242
                  %v244 = vld [vmem:[%s220 + $0xb0] sm:$0xff]
                  %245 = vst [vmem:[%s221 + $0x58] sm:$0xff] %v244
                  %v246 = vld [vmem:[%s220 + $0xc0] sm:$0xff]
                  %247 = vst [vmem:[%s221 + $0x60] sm:$0xff] %v246
                  %v248 = vld [vmem:[%s220 + $0xd0] sm:$0xff]
                  %249 = vst [vmem:[%s221 + $0x68] sm:$0xff] %v248
                  %v250 = vld [vmem:[%s220 + $0xe0] sm:$0xff]
                  %251 = vst [vmem:[%s221 + $0x70] sm:$0xff] %v250
                  %v252 = vld [vmem:[%s220 + $0xf0] sm:$0xff]
                  %253 = vst [vmem:[%s221 + $0x78] sm:$0xff] %v252
                $region56: #{conv_gru_cell.1} parent=50 // loop_footer
                  %s219 = sadd.s32 1, %s215
                $region57: #{conv_gru_cell.1} parent=50 // loop_footer_branch
                  %214 = sbr.rel target = $region53
                $region58: #{conv_gru_cell.1} parent=50 // loop_exit
                  _
              $region51: #{conv_gru_cell.1} parent=35 // pred_fallthru
                _
              // Predicated region
              $region59: #{conv_gru_cell.1} parent=35 // pred_check
                _
              $region60: #{conv_gru_cell.1} parent=35 // pred_check_branch
                %255 = sbr.rel target = $region62
              $region61: #{conv_gru_cell.1} parent=35 // pred_region
                _
              $region62: #{conv_gru_cell.1} parent=35 // pred_fallthru
                _
            $region36: #{conv_gru_cell.1} parent=31 // pred_fallthru
              _
            // Predicated region
            $region37: #{conv_gru_cell.1} parent=31 // pred_check
              _
            $region38: #{conv_gru_cell.1} parent=31 // pred_check_branch
              %170 = sbr.rel target = $region40
            $region39: #{conv_gru_cell.1} parent=31 // pred_region
              loop: start=0, step=1, limit=1
              $region41: #{conv_gru_cell.1} parent=39 // loop_pre_header
                _
              $region42: #{conv_gru_cell.1} parent=39 // loop_header
                %s173 = sphi 0, %s177
                %p174 = scmp.ge.s32.totalorder %s173, 1
                %s178 = sphi %s164, %s164
                %s179 = sphi %s161, %s161
              $region43: #{conv_gru_cell.1} parent=39 // loop_header_branch
                %176 = sbr.rel (%p174) target = $region47
              $region44: #{conv_gru_cell.1} parent=39 // loop_body
                %v180 = vld [vmem:[%s178] sm:$0xff]
                %181 = vst [vmem:[%s179] sm:$0xff] %v180
                %v182 = vld [vmem:[%s178 + $0x10] sm:$0xff]
                %183 = vst [vmem:[%s179 + $0x8] sm:$0xff] %v182
                %v184 = vld [vmem:[%s178 + $0x20] sm:$0xff]
                %185 = vst [vmem:[%s179 + $0x10] sm:$0xff] %v184
                %v186 = vld [vmem:[%s178 + $0x30] sm:$0xff]
                %187 = vst [vmem:[%s179 + $0x18] sm:$0xff] %v186
                %v188 = vld [vmem:[%s178 + $0x40] sm:$0xff]
                %189 = vst [vmem:[%s179 + $0x20] sm:$0xff] %v188
                %v190 = vld [vmem:[%s178 + $0x50] sm:$0xff]
                %191 = vst [vmem:[%s179 + $0x28] sm:$0xff] %v190
                %v192 = vld [vmem:[%s178 + $0x60] sm:$0xff]
                %193 = vst [vmem:[%s179 + $0x30] sm:$0xff] %v192
                %v194 = vld [vmem:[%s178 + $0x70] sm:$0xff]
                %195 = vst [vmem:[%s179 + $0x38] sm:$0xff] %v194
                %v196 = vld [vmem:[%s178 + $0x80] sm:$0xff]
                %197 = vst [vmem:[%s179 + $0x40] sm:$0xff] %v196
                %v198 = vld [vmem:[%s178 + $0x90] sm:$0xff]
                %199 = vst [vmem:[%s179 + $0x48] sm:$0xff] %v198
                %v200 = vld [vmem:[%s178 + $0xa0] sm:$0xff]
                %201 = vst [vmem:[%s179 + $0x50] sm:$0xff] %v200
                %v202 = vld [vmem:[%s178 + $0xb0] sm:$0xff]
                %203 = vst [vmem:[%s179 + $0x58] sm:$0xff] %v202
                %v204 = vld [vmem:[%s178 + $0xc0] sm:$0xff]
                %205 = vst [vmem:[%s179 + $0x60] sm:$0xff] %v204
                %v206 = vld [vmem:[%s178 + $0xd0] sm:$0xff]
                %207 = vst [vmem:[%s179 + $0x68] sm:$0xff] %v206
                %v208 = vld [vmem:[%s178 + $0xe0] sm:$0xff]
                %209 = vst [vmem:[%s179 + $0x70] sm:$0xff] %v208
                %v210 = vld [vmem:[%s178 + $0xf0] sm:$0xff]
                %211 = vst [vmem:[%s179 + $0x78] sm:$0xff] %v210
              $region45: #{conv_gru_cell.1} parent=39 // loop_footer
                %s177 = sadd.s32 1, %s173
              $region46: #{conv_gru_cell.1} parent=39 // loop_footer_branch
                %172 = sbr.rel target = $region42
              $region47: #{conv_gru_cell.1} parent=39 // loop_exit
                _
            $region40: #{conv_gru_cell.1} parent=31 // pred_fallthru
              _
          $region32: #{conv_gru_cell.1} parent=27 // pred_fallthru
            _
          %256 = vnop
        $region28: #{conv_gru_cell.1} parent=23 // pred_fallthru
          _
        // Predicated region
        $region63: #{conv_gru_cell.1} parent=23 // pred_check
          %p257 = pneg %p56
        $region64: #{conv_gru_cell.1} parent=23 // pred_check_branch
          %259 = sbr.rel (%p257) target = $region66
        $region65: #{conv_gru_cell.1} parent=23 // pred_region
          %s260 = smul.u32 2, %s10
          %p261 = scmp.lt.s32.totalorder %s260, 3
          %s262 = scalar_select %p261, %s260, 3
          %s263 = smul.addr %s262, 8
          %s264 = scalar_lea.vmem %s1, %s263
          %s265 = smul.u32 2, %s10
        $region66: #{conv_gru_cell.1} parent=23 // pred_fallthru
          _
      $region24: #{conv_gru_cell.1} parent=5 // pred_fallthru
        _
      %p266 = scmp.le.s32.totalorder 1, %s10
      %p267 = scmp.lt.s32.totalorder %s10, 3
      %p268 = pnand %p266, %p267
      %p269 = pneg %p268
      // Predicated region
      $region67: #{conv_gru_cell.1} parent=5 // pred_check
        _
      $region68: #{conv_gru_cell.1} parent=5 // pred_check_branch
        %271 = sbr.rel (%p268) target = $region70
      $region69: #{conv_gru_cell.1} parent=5 // pred_region
        %s272 = ssub.s32 %s10, 1
        %s273 = sand.u32 %s23, 1
        %s274 = sand.u32 %s23, 1
        %s275 = smul.addr %s274, 128
        %s276 = scalar_lea.vmem [#allocation2], %s275
        // Predicated region
        $region71: #{conv_gru_cell.1} parent=69 // pred_check
          %p277 = pneg %p36
        $region72: #{conv_gru_cell.1} parent=69 // pred_check_branch
          %279 = sbr.rel (%p277) target = $region74
        $region73: #{conv_gru_cell.1} parent=69 // pred_region
          _
        $region74: #{conv_gru_cell.1} parent=69 // pred_fallthru
          _
        %s280 = sand.u32 %s23, 1
        %s281 = sand.u32 %s23, 1
        %s282 = smul.addr %s281, 128
        %s283 = scalar_lea.vmem [#allocation2], %s282
        %p284 = pneg %p36
        %p285 = pneg %p33
        %s286 = smul.u32 2, %s15
        %p287 = scmp.lt.s32.totalorder %s286, 3
        %s288 = scalar_select %p287, %s286, 3
        %s289 = smul.addr %s288, 8
        %s290 = scalar_lea.vmem %s1, %s289
        %p291 = pneg %p62
        %p292 = pneg %p59
        %p293 = pneg %p83
        %p294 = pneg %p80
        %p295 = pneg %p104
        %p296 = pneg %p101
        %p297 = pneg %p130
        %p298 = pneg %p127
        %s299 = smul.u32 2, %s15
        %p300 = scmp.lt.s32.totalorder %s299, 3
        %s301 = scalar_select %p300, %s299, 3
        %s302 = smul.addr %s301, 8
        %s303 = scalar_lea.vmem %s4, %s302
        %s304 = smul.u32 2, %s15
        %s305 = smul.u32 2, %s15
        %p306 = scmp.lt.s32.totalorder %s305, 3
        %s307 = scalar_select %p306, %s305, 3
        %s308 = smul.addr %s307, 8
        %s309 = scalar_lea.vmem %s1, %s308
        %s310 = smul.u32 2, %s15
        %s311 = smul.u32 2, %s15
        %p312 = scmp.lt.s32.totalorder %s311, 3
        %s313 = scalar_select %p312, %s311, 3
        %s314 = smul.addr %s313, 8
        %s315 = scalar_lea.vmem %s4, %s314
        %s316 = smul.u32 2, %s15
        %v318 = vld [vmem:[%s2] sm:$0xf]
        %v319 = vld [vmem:[%s2 + $0x4] sm:$0xf]
        %v320 = vld [vmem:[%s2 + $0x8] sm:$0xf]
        %v321 = vld [vmem:[%s2 + $0xc] sm:$0xf]
        %v322 = vld [vmem:[%s2 + $0x10] sm:$0xf]
        %v323 = vld [vmem:[%s2 + $0x14] sm:$0xf]
        %v324 = vld [vmem:[%s276] sm:$0xff]
        %v325 = vld [vmem:[%s276 + $0x8] sm:$0xff]
        %v326 = vld [vmem:[%s276 + $0x10] sm:$0xff]
        %v327 = vld [vmem:[%s276 + $0x18] sm:$0xff]
        %v328 = vld [vmem:[%s276 + $0x20] sm:$0xff]
        %v329 = vld [vmem:[%s276 + $0x28] sm:$0xff]
        %v330 = vld [vmem:[%s276 + $0x30] sm:$0xff]
        %v331 = vld [vmem:[%s276 + $0x38] sm:$0xff]
        %v332 = vld [vmem:[%s276 + $0x40] sm:$0xff]
        %v333 = vld [vmem:[%s276 + $0x48] sm:$0xff]
        %v334 = vld [vmem:[%s276 + $0x50] sm:$0xff]
        %v335 = vld [vmem:[%s276 + $0x58] sm:$0xff]
        %v336 = vld [vmem:[%s276 + $0x60] sm:$0xff]
        %v337 = vld [vmem:[%s276 + $0x68] sm:$0xff]
        %v338 = vld [vmem:[%s276 + $0x70] sm:$0xff]
        %v339 = vld [vmem:[%s276 + $0x78] sm:$0xff]
        %v346 = vunpack.c.l.b16 %v318
        %v347 = vunpack.c.l.b16 %v319
        %v348 = vunpack.c.l.b16 %v320
        %v349 = vunpack.c.l.b16 %v321
        %v350 = vunpack.c.l.b16 %v322
        %v351 = vunpack.c.l.b16 %v323
        %v352 = vpack.c.b16 %v347, %v346
        %v353 = vpack.c.b16 %v349, %v348
        %v354 = vpack.c.b16 %v351, %v350
        %v374 = vunpack.c.l.b16 %v324
        %v375 = vunpack.c.h.b16 %v324
        %v376 = vunpack.c.l.b16 %v325
        %v377 = vunpack.c.h.b16 %v325
        %v378 = vunpack.c.l.b16 %v326
        %v379 = vunpack.c.h.b16 %v326
        %v380 = vunpack.c.l.b16 %v327
        %v381 = vunpack.c.h.b16 %v327
        %v382 = vunpack.c.l.b16 %v328
        %v383 = vunpack.c.h.b16 %v328
        %v384 = vunpack.c.l.b16 %v329
        %v385 = vunpack.c.h.b16 %v329
        %v386 = vunpack.c.l.b16 %v330
        %v387 = vunpack.c.h.b16 %v330
        %v388 = vunpack.c.l.b16 %v331
        %v389 = vunpack.c.h.b16 %v331
        %v390 = vunpack.c.l.b16 %v332
        %v391 = vunpack.c.h.b16 %v332
        %v392 = vunpack.c.l.b16 %v333
        %v393 = vunpack.c.h.b16 %v333
        %v394 = vunpack.c.l.b16 %v334
        %v395 = vunpack.c.h.b16 %v334
        %v396 = vunpack.c.l.b16 %v335
        %v397 = vunpack.c.h.b16 %v335
        %v398 = vunpack.c.l.b16 %v336
        %v399 = vunpack.c.h.b16 %v336
        %v400 = vunpack.c.l.b16 %v337
        %v401 = vunpack.c.h.b16 %v337
        %v402 = vunpack.c.l.b16 %v338
        %v403 = vunpack.c.h.b16 %v338
        %v404 = vunpack.c.l.b16 %v339
        %v405 = vunpack.c.h.b16 %v339
        %v406 = vpack.c.b16 %v376, %v374
        %v407 = vpack.c.b16 %v377, %v375
        %v408 = vpack.c.b16 %v380, %v378
        %v409 = vpack.c.b16 %v381, %v379
        %v410 = vpack.c.b16 %v384, %v382
        %v411 = vpack.c.b16 %v385, %v383
        %v412 = vpack.c.b16 %v388, %v386
        %v413 = vpack.c.b16 %v389, %v387
        %v414 = vpack.c.b16 %v392, %v390
        %v415 = vpack.c.b16 %v393, %v391
        %v416 = vpack.c.b16 %v396, %v394
        %v417 = vpack.c.b16 %v397, %v395
        %v418 = vpack.c.b16 %v400, %v398
        %v419 = vpack.c.b16 %v401, %v399
        %v420 = vpack.c.b16 %v404, %v402
        %v421 = vpack.c.b16 %v405, %v403
        %438 = vmatprep.subr.bf16.mxu0 %v407
        %439 = vmatpush1.bf16.msra.mxu0 %v406
        %440 = vmatprep.subr.bf16.mxu0 %v409
        %441 = vmatpush1.bf16.msra.mxu0 %v408
        %442 = vmatprep.subr.bf16.mxu0 %v411
        %443 = vmatpush1.bf16.msra.mxu0 %v410
        %444 = vmatprep.subr.bf16.mxu0 %v413
        %445 = vmatpush1.bf16.msra.mxu0 %v412
        %446 = vmatprep.subr.bf16.mxu0 %v415
        %447 = vmatpush1.bf16.msra.mxu0 %v414
        %448 = vmatprep.subr.bf16.mxu0 %v417
        %449 = vmatpush1.bf16.msra.mxu0 %v416
        %450 = vmatprep.subr.bf16.mxu0 %v419
        %451 = vmatpush1.bf16.msra.mxu0 %v418
        %452 = vmatprep.subr.bf16.mxu0 %v421
        %453 = vmatpush1.bf16.msra.mxu0 %v420
        %454 = vmatprep.subr.bf16.mxu0 0
        %455 = vmatpush1.bf16.msra.mxu0 0
        %456 = vmatprep.subr.bf16.mxu0 0
        %457 = vmatpush1.bf16.msra.mxu0 0
        %458 = vmatprep.subr.bf16.mxu0 0
        %459 = vmatpush1.bf16.msra.mxu0 0
        %460 = vmatprep.subr.bf16.mxu0 0
        %461 = vmatpush1.bf16.msra.mxu0 0
        %462 = vmatprep.subr.bf16.mxu0 0
        %463 = vmatpush1.bf16.msra.mxu0 0
        %464 = vmatprep.subr.bf16.mxu0 0
        %465 = vmatpush1.bf16.msra.mxu0 0
        %466 = vmatprep.subr.bf16.mxu0 0
        %467 = vmatpush1.bf16.msra.mxu0 0
        %468 = vmatprep.subr.bf16.mxu0 0
        %469 = vmatpush1.bf16.msra.mxu0 0
        %470 = vmatprep.mubr.bf16.mxu0 0
        %471 = vmatmul.mubr.bf16.gmra.mrb[0].mxu0 %v352
        %v472 = vpop.f32.mrb[0].mxu0
        %v473 = vadd.f32 0.0, %v472
        %v474 = vpop.f32.mrb[0].mxu0
        %v475 = vadd.f32 0.0, %v474
        %v476 = vpop.f32.mrb[0].mxu0
        %v477 = vadd.f32 0.0, %v476
        %v478 = vpop.f32.mrb[0].mxu0
        %v479 = vadd.f32 0.0, %v478
        %480 = vmatprep.mubr.bf16.mxu0 0
        %481 = vmatmul.mubr.bf16.gmra.mrb[0].mxu0 %v353
        %v482 = vpop.f32.mrb[0].mxu0
        %v483 = vadd.f32 0.0, %v482
        %v484 = vpop.f32.mrb[0].mxu0
        %v485 = vadd.f32 0.0, %v484
        %v486 = vpop.f32.mrb[0].mxu0
        %v487 = vadd.f32 0.0, %v486
        %v488 = vpop.f32.mrb[0].mxu0
        %v489 = vadd.f32 0.0, %v488
        %490 = vmatprep.mubr.bf16.mxu0 0
        %491 = vmatmul.mubr.bf16.gmra.mrb[0].mxu0 %v354
        %v492 = vpop.f32.mrb[0].mxu0
        %v493 = vadd.f32 0.0, %v492
        %v494 = vpop.f32.mrb[0].mxu0
        %v495 = vadd.f32 0.0, %v494
        %v496 = vpop.f32.mrb[0].mxu0
        %v497 = vadd.f32 0.0, %v496
        %v498 = vpop.f32.mrb[0].mxu0
        %v499 = vadd.f32 0.0, %v498
        %500 = vdwg.mxu0
        %v501 = vld [vmem:[%s3] sm:$0xff]
        %v502 = vld [vmem:[%s3 + $0x8] sm:$0xff]
        %v503 = vld [vmem:[%s3 + $0x10] sm:$0xff]
        %505 = vset.pattern.permute.xlu0 0
        %506 = vperm.xlu0 %505, %v501
        %v507 = vpop.permute.xlu0 %506
        %v509 = vadd.f32 %v473, %v507
        %v510 = vadd.f32 %v475, %v507
        %v511 = vadd.f32 %v509, %v487
        %v512 = vadd.f32 %v510, %v489
        %v513 = vxor.u32 %v511, 2147483648
        %v514 = vxor.u32 %v512, 2147483648
        %v515 = vmul.f32 %v513, 1.442695
        %v516 = vpow.pop %v515
        %v517 = vmul.f32 %v514, 1.442695
        %v518 = vpow.pop %v517
        %v519 = vadd.f32 %v516, 1.0
        %v520 = vadd.f32 %v518, 1.0
        %v521 = vrcp.pop %v519
        %v522 = vmul.f32 1.0, %v521
        %v523 = vrcp.pop %v520
        %v524 = vmul.f32 1.0, %v523
        %526 = vset.pattern.permute.xlu0 0
        %527 = vperm.xlu0 %526, %v502
        %v528 = vpop.permute.xlu0 %527
        %v530 = vadd.f32 %v477, %v528
        %v531 = vadd.f32 %v479, %v528
        %v532 = vadd.f32 %v530, %v493
        %v533 = vadd.f32 %v531, %v495
        %v534 = vxor.u32 %v532, 2147483648
        %v535 = vxor.u32 %v533, 2147483648
        %v536 = vmul.f32 %v534, 1.442695
        %v537 = vpow.pop %v536
        %v538 = vmul.f32 %v535, 1.442695
        %v539 = vpow.pop %v538
        %v540 = vadd.f32 %v537, 1.0
        %v541 = vadd.f32 %v539, 1.0
        %v542 = vrcp.pop %v540
        %v543 = vmul.f32 1.0, %v542
        %v544 = vrcp.pop %v541
        %v545 = vmul.f32 1.0, %v544
        %547 = vset.pattern.permute.xlu0 0
        %548 = vperm.xlu0 %547, %v503
        %v549 = vpop.permute.xlu0 %548
        %v551 = vadd.f32 %v483, %v549
        %v552 = vadd.f32 %v485, %v549
        %v553 = vmul.f32 %v522, %v497
        %v554 = vmul.f32 %v524, %v499
        %v555 = vadd.f32 %v551, %v553
        %v556 = vadd.f32 %v552, %v554
        %v557 = vtanh.pop %v555
        %v558 = vtanh.pop %v556
        %v559 = vld [vmem:[%s309] sm:$0xff]
        %v560 = vld [vmem:[%s309 + $0x8] sm:$0xff]
        %v561 = vsub.f32 1.0, %v543
        %v562 = vsub.f32 1.0, %v545
        %v563 = vmul.f32 %v557, %v561
        %v564 = vmul.f32 %v558, %v562
        %v565 = vmul.f32 %v543, %v559
        %v566 = vmul.f32 %v545, %v560
        %v567 = vadd.f32 %v563, %v565
        %v568 = vadd.f32 %v564, %v566
        %569 = vst [vmem:[%s315] sm:$0xff] %v567
        %570 = vst [vmem:[%s315 + $0x8] sm:$0xff] %v568
        %s571 = smul.u32 2, %s15
        %p572 = scmp.lt.s32.totalorder %s571, 3
        %s573 = scalar_select %p572, %s571, 3
        %s574 = smul.addr %s573, 8
        %s575 = scalar_lea.vmem %s4, %s574
        // Predicated region
        $region75: #{conv_gru_cell.1} parent=69 // pred_check
          %p576 = pneg %p127
        $region76: #{conv_gru_cell.1} parent=69 // pred_check_branch
          %578 = sbr.rel (%p576) target = $region78
        $region77: #{conv_gru_cell.1} parent=69 // pred_region
          %s579 = smul.u32 2, %s15
        $region78: #{conv_gru_cell.1} parent=69 // pred_fallthru
          _
      $region70: #{conv_gru_cell.1} parent=5 // pred_fallthru
        _
      %p580 = scmp.le.s32.totalorder 2, %s10
      // Predicated region
      $region79: #{conv_gru_cell.1} parent=5 // pred_check
        %p581 = pneg %p580
      $region80: #{conv_gru_cell.1} parent=5 // pred_check_branch
        %583 = sbr.rel (%p581) target = $region82
      $region81: #{conv_gru_cell.1} parent=5 // pred_region
        %s584 = ssub.s32 %s10, 2
        // Predicated region
        $region83: #{conv_gru_cell.1} parent=81 // pred_check
          %p585 = pneg %p133
        $region84: #{conv_gru_cell.1} parent=81 // pred_check_branch
          %587 = sbr.rel (%p585) target = $region86
        $region85: #{conv_gru_cell.1} parent=81 // pred_region
          %s588 = smul.u32 2, %s16
          %p589 = scmp.lt.s32.totalorder %s588, 3
          %s590 = scalar_select %p589, %s588, 3
          %s591 = smul.addr %s590, 8
          %s592 = scalar_lea.vmem %s4, %s591
        $region86: #{conv_gru_cell.1} parent=81 // pred_fallthru
          _
      $region82: #{conv_gru_cell.1} parent=5 // pred_fallthru
        _
    $region6: #{conv_gru_cell.1} parent=1 // loop_footer
      %s14 = sadd.s32 1, %s10
    $region7: #{conv_gru_cell.1} parent=1 // loop_footer_branch
      %9 = sbr.rel target = $region3
    $region8: #{conv_gru_cell.1} parent=1 // loop_exit
      _

</llo_original>
